<compile_context>
chip_gen: v7x
topology: tpu7x:2x2x1
jax: 0.10.0
libtpu: 0.0.40
codegen_flags: <defaults>
</compile_context>

<pallas_src>
import functools

import numpy as np
import jax
import jax.numpy as jnp
from jax.experimental import pallas as pl
from jax.experimental.pallas import tpu as pltpu


def _causal_conv1d_kernel(xph_ref, w_ref, b_ref, o_ref, *, K, S, D, N):
    """One grid step == one C_out slab. Everything stays in VMEM.

    xph_ref: [S, C_in, B*Tq]   phase-split, zero-padded input
    w_ref  : [C_out_blk, K*C_in]  flattened conv weight (k-major, ci-minor)
    b_ref  : [C_out_blk, 1]
    o_ref  : [C_out_blk, N]    N = B*Tq - q_max lane-dense output slab
    """
    x_ph = xph_ref[...]                                  # [S, C_in, B*Tq]

    # Gather the K dilated taps with static, contiguous lane slices and stack
    # them into a single im2col slab -> exactly one MXU matmul below.
    cols = []
    for k in range(K):
        r = (k * D) % S                                  # phase of this tap
        q = (k * D) // S                                 # offset within phase
        cols.append(x_ph[r, :, q:q + N])                 # [C_in, N]
    x_col = jnp.concatenate(cols, axis=0) if K > 1 else cols[0]   # [K*C_in, N]

    y = jnp.dot(w_ref[...], x_col, preferred_element_type=jnp.float32)
    o_ref[...] = (y + b_ref[...]).astype(o_ref.dtype)


def causal_conv1d(x, weight, bias, *, dilation, stride, mxu_bf16=False):
    """x: [B, C_in, T]; weight: [C_out, C_in, K] (PyTorch Conv1d layout)."""
    B, C_in, T = x.shape
    C_out, _, K = weight.shape
    d, s = int(dilation), int(stride)
    P = d * (K - 1)

    # PyTorch output length and causal trim (same integer arithmetic).
    L_conv = (T + 2 * P - d * (K - 1) - 1) // s + 1
    last_n = (2 * P - K) // s + 1
    L_out = L_conv - last_n if last_n > 0 else L_conv

    # ---- wrapper-side layout plumbing (no compute) -------------------------
    # Pad like PyTorch (P on both sides), round time up to a multiple of s.
    T_pad = T + 2 * P
    pad_r = (-T_pad) % s
    T_pad += pad_r
    Tq = T_pad // s
    x_pad = jnp.pad(x.astype(jnp.float32), ((0, 0), (0, 0), (P, P + pad_r)))
    # Phase split + batch fold: x_ph[r, ci, b*Tq + t] = x_pad[b, ci, t*s + r]
    x_ph = (x_pad.reshape(B, C_in, Tq, s)
                 .transpose(3, 1, 0, 2)
                 .reshape(s, C_in, B * Tq))

    q_max = ((K - 1) * d) // s
    N = B * Tq - q_max                      # common width of all tap slices

    # Flatten weight so rows match the in-kernel concat order (k-major).
    w_flat = (jnp.transpose(weight, (0, 2, 1))
                 .reshape(C_out, K * C_in).astype(jnp.float32))
    b2 = bias.reshape(C_out, 1).astype(jnp.float32)

    if mxu_bf16:   # v6e/v7x: native bf16 MXU operands, f32 accumulation
        x_ph = x_ph.astype(jnp.bfloat16)
        w_flat = w_flat.astype(jnp.bfloat16)

    # 2-way parallel split over C_out so both v7x TensorCores get work; on
    # v5e/v6e this is just one extra (cheap) serial step.
    co_split = 2 if (C_out % 2 == 0 and C_out >= 2) else 1
    co_blk = C_out // co_split

    kernel = functools.partial(_causal_conv1d_kernel, K=K, S=s, D=d, N=N)
    y_full = pl.pallas_call(
        kernel,
        out_shape=jax.ShapeDtypeStruct((C_out, N), jnp.float32),
        grid=(co_split,),
        in_specs=[
            pl.BlockSpec((s, C_in, B * Tq), lambda i: (0, 0, 0)),   # x_ph
            pl.BlockSpec((co_blk, K * C_in), lambda i: (i, 0)),     # weight
            pl.BlockSpec((co_blk, 1), lambda i: (i, 0)),            # bias
        ],
        out_specs=pl.BlockSpec((co_blk, N), lambda i: (i, 0)),
        compiler_params=pltpu.CompilerParams(
            dimension_semantics=("parallel",)),
    )(x_ph, w_flat, b2)

    # Column b*Tq + o of y_full holds conv output position o of batch b.
    y_full = jnp.pad(y_full, ((0, 0), (0, q_max)))          # -> [C_out, B*Tq]
    y = y_full.reshape(C_out, B, Tq)[:, :, :L_out]          # causal trim
    return jnp.transpose(y, (1, 0, 2)).astype(x.dtype)      # [B, C_out, L_out]


def _reference(x, W, b, K, d, s):
    """Pure numpy reference matching the PyTorch module semantics."""
    B, C_in, T = x.shape
    C_out = W.shape[0]
    P = d * (K - 1)
    xp = np.zeros((B, C_in, T + 2 * P), np.float32)
    xp[:, :, P:P + T] = x
    L_conv = (T + 2 * P - d * (K - 1) - 1) // s + 1
    y = np.zeros((B, C_out, L_conv), np.float32)
    for o in range(L_conv):
        acc = np.zeros((B, C_out), np.float32)
        for k in range(K):
            acc += xp[:, :, o * s + k * d] @ W[:, :, k].T
        y[:, :, o] = acc + b[None, :]
    last_n = (2 * P - K) // s + 1
    if last_n > 0:
        y = y[:, :, :-last_n]
    return y


if __name__ == "__main__":
    key = jax.random.PRNGKey(0)
    configs = [
        # (B, C_in, C_out, K, dilation, stride, T)
        dict(B=2, C_in=4, C_out=16, K=4, dilation=1, stride=1, T=16),
        dict(B=2, C_in=4, C_out=16, K=4, dilation=2, stride=2, T=16),
    ]
    for cfg in configs:
        key, kx, kw, kb = jax.random.split(key, 4)
        x = jax.random.normal(kx, (cfg["B"], cfg["C_in"], cfg["T"]), jnp.float32)
        w = 0.3 * jax.random.normal(
            kw, (cfg["C_out"], cfg["C_in"], cfg["K"]), jnp.float32)
        b = 0.1 * jax.random.normal(kb, (cfg["C_out"],), jnp.float32)

        out = causal_conv1d(x, w, b, dilation=cfg["dilation"],
                            stride=cfg["stride"])
        out = jax.block_until_ready(out)

        ref = _reference(np.asarray(x), np.asarray(w), np.asarray(b),
                         cfg["K"], cfg["dilation"], cfg["stride"])
        assert out.shape == ref.shape, (out.shape, ref.shape)
        np.testing.assert_allclose(np.asarray(out), ref, rtol=1e-4, atol=1e-4)

    print("KERNEL_OK")
</pallas_src>

<mosaic_0001>
module attributes {stable_mosaic.version = 11 : i64} {
  func.func @_causal_conv1d_kernel(%arg0: i32, %arg1: memref<1x4x44xf32, #tpu.memory_space<vmem>>, %arg2: memref<8x16xf32, #tpu.memory_space<vmem>>, %arg3: memref<8x1xf32, #tpu.memory_space<vmem>>, %arg4: memref<8x41xf32, #tpu.memory_space<vmem>>) attributes {dimension_semantics = [#tpu.dimension_semantics<parallel>], iteration_bounds = array<i64: 2>, scalar_prefetch = 0 : i64, scratch_operands = 0 : i64, tpu.core_type = #tpu.core_type<tc>, window_params = [{pipeline_mode = #tpu.pipeline_mode<synchronous>, transform_indices = @transform_0, window_bounds = array<i64: 1, 4, 44>}, {transform_indices = @transform_1, window_bounds = array<i64: 8, 16>}, {transform_indices = @transform_2, window_bounds = array<i64: 8, 1>}, {transform_indices = @transform_3, window_bounds = array<i64: 8, 41>}]} {
    %c0 = arith.constant 0 : index
    %c0_0 = arith.constant 0 : index
    %c0_1 = arith.constant 0 : index
    %0 = vector.load %arg1[%c0, %c0_0, %c0_1] : memref<1x4x44xf32, #tpu.memory_space<vmem>>, vector<1x4x44xf32>
    %1 = vector.extract_strided_slice %0 {offsets = [0, 0, 0], sizes = [1, 4, 41], strides = [1, 1, 1]} : vector<1x4x44xf32> to vector<1x4x41xf32>
    %2 = vector.shape_cast %1 : vector<1x4x41xf32> to vector<4x41xf32>
    %3 = vector.extract_strided_slice %0 {offsets = [0, 0, 1], sizes = [1, 4, 41], strides = [1, 1, 1]} : vector<1x4x44xf32> to vector<1x4x41xf32>
    %4 = vector.shape_cast %3 : vector<1x4x41xf32> to vector<4x41xf32>
    %5 = vector.extract_strided_slice %0 {offsets = [0, 0, 2], sizes = [1, 4, 41], strides = [1, 1, 1]} : vector<1x4x44xf32> to vector<1x4x41xf32>
    %6 = vector.shape_cast %5 : vector<1x4x41xf32> to vector<4x41xf32>
    %7 = vector.extract_strided_slice %0 {offsets = [0, 0, 3], sizes = [1, 4, 41], strides = [1, 1, 1]} : vector<1x4x44xf32> to vector<1x4x41xf32>
    %8 = vector.shape_cast %7 : vector<1x4x41xf32> to vector<4x41xf32>
    %9 = tpu.concatenate %2, %4, %6, %8 in 0 : vector<4x41xf32>, vector<4x41xf32>, vector<4x41xf32>, vector<4x41xf32> -> vector<16x41xf32>
    %c0_2 = arith.constant 0 : index
    %c0_3 = arith.constant 0 : index
    %10 = vector.load %arg2[%c0_2, %c0_3] : memref<8x16xf32, #tpu.memory_space<vmem>>, vector<8x16xf32>
    %cst = arith.constant dense<0.000000e+00> : vector<8x41xf32>
    %11 = tpu.matmul %10, %9, %cst {dimension_numbers = #tpu.dot_dimension_numbers<[1], [0], [0], [1], [0, 0, 1, 1], [], []>} : vector<8x16xf32>, vector<16x41xf32>, vector<8x41xf32> -> vector<8x41xf32>
    %c0_4 = arith.constant 0 : index
    %c0_5 = arith.constant 0 : index
    %12 = vector.load %arg3[%c0_4, %c0_5] : memref<8x1xf32, #tpu.memory_space<vmem>>, vector<8x1xf32>
    %13 = vector.broadcast %12 : vector<8x1xf32> to vector<8x41xf32>
    %14 = arith.addf %11, %13 : vector<8x41xf32>
    %c0_6 = arith.constant 0 : index
    %c0_7 = arith.constant 0 : index
    %15 = vector.load %arg4[%c0_6, %c0_7] : memref<8x41xf32, #tpu.memory_space<vmem>>, vector<8x41xf32>
    tpu.vector_store %arg4[%c0_6, %c0_7], %14 {strides = array<i32>} : memref<8x41xf32, #tpu.memory_space<vmem>>, vector<8x41xf32>,
    return
  }
  func.func @transform_0(%arg0: i32) -> (i32, i32, i32) {
    %c0_i32 = arith.constant 0 : i32
    %c0_i32_0 = arith.constant 0 : i32
    %c0_i32_1 = arith.constant 0 : i32
    %c0_i32_2 = arith.constant 0 : i32
    return %c0_i32, %c0_i32_0, %c0_i32_1 : i32, i32, i32
  }
  func.func @transform_1(%arg0: i32) -> (i32, i32) {
    %c0_i32 = arith.constant 0 : i32
    %c0_i32_0 = arith.constant 0 : i32
    return %arg0, %c0_i32 : i32, i32
  }
  func.func @transform_2(%arg0: i32) -> (i32, i32) {
    %c0_i32 = arith.constant 0 : i32
    %c0_i32_0 = arith.constant 0 : i32
    return %arg0, %c0_i32 : i32, i32
  }
  func.func @transform_3(%arg0: i32) -> (i32, i32) {
    %c0_i32 = arith.constant 0 : i32
    %c0_i32_0 = arith.constant 0 : i32
    return %arg0, %c0_i32 : i32, i32
  }
}

</mosaic_0001>

<llo_original>
// kernel: tpu_custom_call.1
$region0: #{tpu_custom_call.1}
  #allocation0 [shape = 'u32[]', space=smem, size = 0x4, offset = 0x4, fixed_abs, tag = 'smem constant byte address 0x4 - core index']
  #allocation1 [shape = 'u32[144,128]{1,0:T(1,128)}', space=vmem, size = 0x12000, scoped, tag = 'internal scratch']
  %s0 = inlined_call_operand.vmem [shape: f32[1,4,44], index: 0, kind: input, shape index: {}]
  %s1 = inlined_call_operand.vmem [shape: f32[16,16], index: 1, kind: input, shape index: {}]
  %s2 = inlined_call_operand.vmem [shape: f32[16,1], index: 2, kind: input, shape index: {}]
  %s3 = inlined_call_operand.hbm [shape: f32[16,41], index: 3, kind: output, shape index: {}]
  %s4 = sld [smem:[#allocation0]]
  $region45: #{tpu_custom_call.1} parent=0
    _
  %s6 = ssub.s32 1, %s4
  %s7 = scalar_select 0, %s6, %s4
  $region1: #{tpu_custom_call.1} parent=0
    #allocation2 [shape = 'u8[8192]{0}', space=vmem, size = 0x2000, scoped, tag = 'output window, operand 0']
    #allocation3 [shape = 's32[2]{0}', space=sflag, size = 0x8, scoped, tag = 'scoped memory for tpu_custom_call.1']
    %8 = vsyncpa [#allocation3], 0
    %s9 = scalar_lea.sflag [#allocation3], 1
    %10 = vsyncpa %s9, 0
    loop: start=0, step=1, limit=4
    $region2: #{tpu_custom_call.1} parent=1 // loop_pre_header
      _
    $region3: #{tpu_custom_call.1} parent=1 // loop_header
      %s12 = sphi 0, %s16
      %p13 = scmp.ge.s32.totalorder %s12, 4
      %s20 = sphi 0, %s20
      %s22 = sphi 0, %s20
      %s23 = sphi 0, %s22
      %s37 = sphi 0, %s23
      %s43 = sphi 0, %s45
      %s46 = sphi 0, %s43
      %s47 = sphi 0, %s46
      %s63 = sphi 0, %s47
      %s69 = sphi 0, %s71
      %s72 = sphi 0, %s69
      %s73 = sphi 0, %s72
      %s89 = sphi 0, %s73
      %s95 = sphi 0, %s97
      %s98 = sphi 0, %s95
      %s99 = sphi 0, %s98
      %s115 = sphi 0, %s99
    $region4: #{tpu_custom_call.1} parent=1 // loop_header_branch
      %15 = sbr.rel (%p13) target = $region8
    $region5: #{tpu_custom_call.1} parent=1 // loop_body
      %s17 = ssub.s32 %s12, 1
      %s18 = ssub.s32 %s12, 2
      %s19 = sadd.s32 %s12, 1
      %s21 = sadd.s32 %s20, 1
      %p24 = scmp.eq.s32.totalorder %s12, 1
      %p25 = scmp.ne.s32.totalorder %s20, %s22
      %p26 = scmp.eq.s32.totalorder %s12, 0
      %p27 = por %p25, %p26
      %p28 = scmp.ne.s32.totalorder %s20, %s22
      %p29 = scmp.eq.s32.totalorder %s17, 1
      %p30 = por %p28, %p29
      %p31 = scmp.ne.s32.totalorder %s22, %s23
      %p32 = scmp.eq.s32.totalorder %s17, 0
      %p33 = por %p31, %p32
      %p34 = scmp.ne.s32.totalorder %s22, %s23
      %p35 = scmp.eq.s32.totalorder %s18, 1
      %p36 = por %p34, %p35
      %p38 = scmp.ne.s32.totalorder %s23, %s37
      %p39 = scmp.eq.s32.totalorder %s18, 0
      %p40 = por %p38, %p39
      %s41 = ssub.s32 %s12, %s19
      %p42 = scmp.eq.s32.totalorder %s41, 0
      %s44 = sadd.s32 %s43, 1
      %s45 = scalar_select %p42, %s43, %s44
      %p48 = pneg %p42
      %p49 = scmp.eq.s32.totalorder %s12, 1
      %p50 = por %p48, %p49
      %p51 = scmp.ne.s32.totalorder %s43, %s46
      %p52 = scmp.eq.s32.totalorder %s12, 0
      %p53 = por %p51, %p52
      %p54 = scmp.ne.s32.totalorder %s43, %s46
      %p55 = scmp.eq.s32.totalorder %s17, 1
      %p56 = por %p54, %p55
      %p57 = scmp.ne.s32.totalorder %s46, %s47
      %p58 = scmp.eq.s32.totalorder %s17, 0
      %p59 = por %p57, %p58
      %p60 = scmp.ne.s32.totalorder %s46, %s47
      %p61 = scmp.eq.s32.totalorder %s18, 1
      %p62 = por %p60, %p61
      %p64 = scmp.ne.s32.totalorder %s47, %s63
      %p65 = scmp.eq.s32.totalorder %s18, 0
      %p66 = por %p64, %p65
      %s67 = ssub.s32 %s12, %s19
      %p68 = scmp.eq.s32.totalorder %s67, 0
      %s70 = sadd.s32 %s69, 1
      %s71 = scalar_select %p68, %s69, %s70
      %p74 = pneg %p68
      %p75 = scmp.eq.s32.totalorder %s12, 1
      %p76 = por %p74, %p75
      %p77 = scmp.ne.s32.totalorder %s69, %s72
      %p78 = scmp.eq.s32.totalorder %s12, 0
      %p79 = por %p77, %p78
      %p80 = scmp.ne.s32.totalorder %s69, %s72
      %p81 = scmp.eq.s32.totalorder %s17, 1
      %p82 = por %p80, %p81
      %p83 = scmp.ne.s32.totalorder %s72, %s73
      %p84 = scmp.eq.s32.totalorder %s17, 0
      %p85 = por %p83, %p84
      %p86 = scmp.ne.s32.totalorder %s72, %s73
      %p87 = scmp.eq.s32.totalorder %s18, 1
      %p88 = por %p86, %p87
      %p90 = scmp.ne.s32.totalorder %s73, %s89
      %p91 = scmp.eq.s32.totalorder %s18, 0
      %p92 = por %p90, %p91
      %s93 = ssub.s32 %s12, %s19
      %p94 = scmp.eq.s32.totalorder %s93, 0
      %s96 = sadd.s32 %s95, 1
      %s97 = scalar_select %p94, %s95, %s96
      %p100 = pneg %p94
      %p101 = scmp.eq.s32.totalorder %s12, 1
      %p102 = por %p100, %p101
      %p103 = scmp.ne.s32.totalorder %s95, %s98
      %p104 = scmp.eq.s32.totalorder %s12, 0
      %p105 = por %p103, %p104
      %p106 = scmp.ne.s32.totalorder %s95, %s98
      %p107 = scmp.eq.s32.totalorder %s17, 1
      %p108 = por %p106, %p107
      %p109 = scmp.ne.s32.totalorder %s98, %s99
      %p110 = scmp.eq.s32.totalorder %s17, 0
      %p111 = por %p109, %p110
      %p112 = scmp.ne.s32.totalorder %s98, %s99
      %p113 = scmp.eq.s32.totalorder %s18, 1
      %p114 = por %p112, %p113
      %p116 = scmp.ne.s32.totalorder %s99, %s115
      %p117 = scmp.eq.s32.totalorder %s18, 0
      %p118 = por %p116, %p117
      %p119 = scmp.le.s32.totalorder 1, %s12
      %p120 = scmp.lt.s32.totalorder %s12, 3
      %p121 = pnand %p119, %p120
      %p122 = pneg %p121
      // Predicated region
      $region9: #{tpu_custom_call.1} parent=5 // pred_check
        _
      $region10: #{tpu_custom_call.1} parent=5 // pred_check_branch
        %124 = sbr.rel (%p121) target = $region12
      $region11: #{tpu_custom_call.1} parent=5 // pred_region
        %s125 = ssub.s32 %s12, 1
        // Predicated region
        $region13: #{tpu_custom_call.1} parent=11 // pred_check
          %p126 = pneg %p33
        $region14: #{tpu_custom_call.1} parent=11 // pred_check_branch
          %128 = sbr.rel (%p126) target = $region16
        $region15: #{tpu_custom_call.1} parent=11 // pred_region
          _
        $region16: #{tpu_custom_call.1} parent=11 // pred_fallthru
          _
      $region12: #{tpu_custom_call.1} parent=5 // pred_fallthru
        _
      %p129 = scmp.lt.s32.totalorder %s12, 2
      // Predicated region
      $region17: #{tpu_custom_call.1} parent=5 // pred_check
        %p130 = pneg %p129
      $region18: #{tpu_custom_call.1} parent=5 // pred_check_branch
        %132 = sbr.rel (%p130) target = $region20
      $region19: #{tpu_custom_call.1} parent=5 // pred_region
        // Predicated region
        $region21: #{tpu_custom_call.1} parent=19 // pred_check
          %p133 = pneg %p53
        $region22: #{tpu_custom_call.1} parent=19 // pred_check_branch
          %135 = sbr.rel (%p133) target = $region24
        $region23: #{tpu_custom_call.1} parent=19 // pred_region
          %p136 = scmp.lt.s32.totalorder %s12, 1
          %s137 = scalar_select %p136, %s12, 1
          %s138 = smul.addr %s137, 8
          %s139 = scalar_lea.vmem %s1, %s138
        $region24: #{tpu_custom_call.1} parent=19 // pred_fallthru
          _
        // Predicated region
        $region25: #{tpu_custom_call.1} parent=19 // pred_check
          %p140 = pneg %p79
        $region26: #{tpu_custom_call.1} parent=19 // pred_check_branch
          %142 = sbr.rel (%p140) target = $region28
        $region27: #{tpu_custom_call.1} parent=19 // pred_region
          %p143 = scmp.lt.s32.totalorder %s12, 1
          %s144 = scalar_select %p143, %s12, 1
          %s145 = smul.addr %s144, 8
          %s146 = scalar_lea.vmem %s2, %s145
        $region28: #{tpu_custom_call.1} parent=19 // pred_fallthru
          _
      $region20: #{tpu_custom_call.1} parent=5 // pred_fallthru
        _
      %p147 = scmp.le.s32.totalorder 1, %s12
      %p148 = scmp.lt.s32.totalorder %s12, 3
      %p149 = pnand %p147, %p148
      %p150 = pneg %p149
      // Predicated region
      $region29: #{tpu_custom_call.1} parent=5 // pred_check
        _
      $region30: #{tpu_custom_call.1} parent=5 // pred_check_branch
        %152 = sbr.rel (%p149) target = $region32
      $region31: #{tpu_custom_call.1} parent=5 // pred_region
        %s153 = ssub.s32 %s12, 1
        %p154 = pneg %p33
        %p155 = pneg %p30
        %p156 = scmp.lt.s32.totalorder %s17, 1
        %s157 = scalar_select %p156, %s17, 1
        %s158 = smul.addr %s157, 8
        %s159 = scalar_lea.vmem %s1, %s158
        %p160 = pneg %p59
        %p161 = pneg %p56
        %p162 = scmp.lt.s32.totalorder %s17, 1
        %s163 = scalar_select %p162, %s17, 1
        %s164 = smul.addr %s163, 8
        %s165 = scalar_lea.vmem %s2, %s164
        %p166 = pneg %p85
        %p167 = pneg %p82
        %p168 = pneg %p111
        %p169 = pneg %p108
        %s170 = sand.u32 %s98, 1
        %s171 = scalar_lea.sflag [#allocation3], %s170
        %s172 = sand.u32 %s98, 1
        %s173 = smul.addr %s172, 8
        %s174 = scalar_lea.vmem [#allocation2], %s173
        %p175 = scmp.lt.s32.totalorder %s17, 1
        %s176 = scalar_select %p175, %s17, 1
        %s177 = smul.addr %s176, 8
        %s178 = scalar_lea.vmem %s1, %s177
        %p179 = scmp.lt.s32.totalorder %s17, 1
        %s180 = scalar_select %p179, %s17, 1
        %s181 = smul.addr %s180, 8
        %s182 = scalar_lea.vmem %s2, %s181
        %v183 = vld [vmem:[%s0] sm:$0xf]
        %v185 = vrot.slane %v183, 4
        %186 = vrot.lane.b32.xlu0 %v185, 127
        %v187 = vpop.permute.xlu0 %186
        %189 = vrot.lane.b32.xlu0 %v183, 126
        %v190 = vpop.permute.xlu0 %189
        %192 = vrot.lane.b32.xlu0 %v185, 125
        %v193 = vpop.permute.xlu0 %192
        %vm195 = vcmask 1043456
        %v196 = vsel %vm195, %v183, %v187
        %v197 = vsel %vm195, %v190, %v193
        %v198 = vld [vmem:[%s178] sm:$0xff]
        %v199 = vld [vmem:[%s182] sm:$0xff]
        %201 = vset.pattern.permute.xlu0 0
        %202 = vperm.xlu0 %201, %v199
        %v203 = vpop.permute.xlu0 %202
        %vm205 = vcmask 130048
        %v207 = vsel %vm205, %v198, 0
        %209 = vmatprep.subr.mxu0 0.0
        %210 = vmatpush1.msra.mxu0 %v196
        %211 = vmatprep.subr.mxu0 0.0
        %212 = vmatpush1.msra.mxu0 %v197
        %213 = vmatprep.subr.mxu0 0.0
        %214 = vmatpush1.msra.mxu0 0.0
        %215 = vmatprep.subr.mxu0 0.0
        %216 = vmatpush1.msra.mxu0 0.0
        %217 = vmatprep.subr.mxu0 0.0
        %218 = vmatpush1.msra.mxu0 0.0
        %219 = vmatprep.subr.mxu0 0.0
        %220 = vmatpush1.msra.mxu0 0.0
        %221 = vmatprep.subr.mxu0 0.0
        %222 = vmatpush1.msra.mxu0 0.0
        %223 = vmatprep.subr.mxu0 0.0
        %224 = vmatpush1.msra.mxu0 0.0
        %225 = vmatprep.subr.mxu0 0.0
        %226 = vmatpush1.msra.mxu0 0.0
        %227 = vmatprep.subr.mxu0 0.0
        %228 = vmatpush1.msra.mxu0 0.0
        %229 = vmatprep.subr.mxu0 0.0
        %230 = vmatpush1.msra.mxu0 0.0
        %231 = vmatprep.subr.mxu0 0.0
        %232 = vmatpush1.msra.mxu0 0.0
        %233 = vmatprep.subr.mxu0 0.0
        %234 = vmatpush1.msra.mxu0 0.0
        %235 = vmatprep.subr.mxu0 0.0
        %236 = vmatpush1.msra.mxu0 0.0
        %237 = vmatprep.subr.mxu0 0.0
        %238 = vmatpush1.msra.mxu0 0.0
        %239 = vmatprep.subr.mxu0 0.0
        %240 = vmatpush1.msra.mxu0 0.0
        %241 = vmatprep.subr.mxu0 0.0
        %242 = vmatpush1.msra.mxu0 0.0
        %243 = vmatprep.subr.mxu0 0.0
        %244 = vmatpush1.msra.mxu0 0.0
        %245 = vmatprep.subr.mxu0 0.0
        %246 = vmatpush1.msra.mxu0 0.0
        %247 = vmatprep.subr.mxu0 0.0
        %248 = vmatpush1.msra.mxu0 0.0
        %249 = vmatprep.subr.mxu0 0.0
        %250 = vmatpush1.msra.mxu0 0.0
        %251 = vmatprep.subr.mxu0 0.0
        %252 = vmatpush1.msra.mxu0 0.0
        %253 = vmatprep.subr.mxu0 0.0
        %254 = vmatpush1.msra.mxu0 0.0
        %255 = vmatprep.subr.mxu0 0.0
        %256 = vmatpush1.msra.mxu0 0.0
        %257 = vmatprep.subr.mxu0 0.0
        %258 = vmatpush1.msra.mxu0 0.0
        %259 = vmatprep.subr.mxu0 0.0
        %260 = vmatpush1.msra.mxu0 0.0
        %261 = vmatprep.subr.mxu0 0.0
        %262 = vmatpush1.msra.mxu0 0.0
        %263 = vmatprep.subr.mxu0 0.0
        %264 = vmatpush1.msra.mxu0 0.0
        %265 = vmatprep.subr.mxu0 0.0
        %266 = vmatpush1.msra.mxu0 0.0
        %267 = vmatprep.subr.mxu0 0.0
        %268 = vmatpush1.msra.mxu0 0.0
        %269 = vmatprep.subr.mxu0 0.0
        %270 = vmatpush1.msra.mxu0 0.0
        %271 = vmatprep.subr.mxu0 0.0
        %272 = vmatpush1.msra.mxu0 0.0
        %273 = vmatprep.mubr.f32.mxu0 0.0
        %274 = vmatmul.mubr.f32.gmra.mrb[0].mxu0 %v207
        %v275 = vpop.f32.mrb[0].mxu0
        %v276 = vadd.f32 %v203, %v275
        %v277 = vpop.f32.mrb[0].mxu0
        %278 = vdwg.mxu0
        %vm279 = vcmask 334848
        %280 = vst.msk [vmem:[%s174] sm:$0xff] %vm279, %v276
        %s281 = sand.u32 %s98, 1
        %s282 = scalar_lea.sflag [#allocation3], %s281
        %s283 = sand.u32 %s98, 1
        %s284 = smul.addr %s283, 8
        %s285 = scalar_lea.vmem [#allocation2], %s284
        // Predicated region
        $region33: #{tpu_custom_call.1} parent=31 // pred_check
          %p286 = pneg %p108
        $region34: #{tpu_custom_call.1} parent=31 // pred_check_branch
          %288 = sbr.rel (%p286) target = $region36
        $region35: #{tpu_custom_call.1} parent=31 // pred_region
          %s290 = ssub.s32 128, 128
          %291 = vsyncadd %s282, %s290
          %s292 = smul.addr %s17, 128
          %s293 = scalar_lea.hbm %s3, %s292
          %s295 = sshll.u32 %s285, 4
          %s296 = int_to_ptr.vmem [resolvable:$true] %s295
          %298 = dma.vmem_to_hbm [thread:$0]  %s296, 128, %s293, %s282
        $region36: #{tpu_custom_call.1} parent=31 // pred_fallthru
          _
      $region32: #{tpu_custom_call.1} parent=5 // pred_fallthru
        _
      %p299 = scmp.le.s32.totalorder 2, %s12
      // Predicated region
      $region37: #{tpu_custom_call.1} parent=5 // pred_check
        %p300 = pneg %p299
      $region38: #{tpu_custom_call.1} parent=5 // pred_check_branch
        %302 = sbr.rel (%p300) target = $region40
      $region39: #{tpu_custom_call.1} parent=5 // pred_region
        %s303 = ssub.s32 %s12, 2
        // Predicated region
        $region41: #{tpu_custom_call.1} parent=39 // pred_check
          %p304 = pneg %p114
        $region42: #{tpu_custom_call.1} parent=39 // pred_check_branch
          %306 = sbr.rel (%p304) target = $region44
        $region43: #{tpu_custom_call.1} parent=39 // pred_region
          %s307 = sand.u32 %s99, 1
          %s308 = scalar_lea.sflag [#allocation3], %s307
          %s309 = sand.u32 %s99, 1
          %s310 = smul.addr %s309, 8
          %s311 = scalar_lea.vmem [#allocation2], %s310
          %312 = dma.done %s308, 128
        $region44: #{tpu_custom_call.1} parent=39 // pred_fallthru
          _
      $region40: #{tpu_custom_call.1} parent=5 // pred_fallthru
        _
    $region6: #{tpu_custom_call.1} parent=1 // loop_footer
      %s16 = sadd.s32 1, %s12
    $region7: #{tpu_custom_call.1} parent=1 // loop_footer_branch
      %11 = sbr.rel target = $region3
    $region8: #{tpu_custom_call.1} parent=1 // loop_exit
      _
    %313 = vsyncpa [#allocation3], 1
    %s314 = scalar_lea.sflag [#allocation3], 1
    %315 = vsyncpa %s314, 1

</llo_original>
